<compile_context>
chip_gen: v7x
topology: tpu7x:2x2x1
jax: 0.10.0
libtpu: 0.0.40
codegen_flags: <defaults>
</compile_context>

<pallas_src>
import jax
import jax.numpy as jnp
from jax.experimental import pallas as pl
from jax.experimental.pallas import tpu as pltpu

_TARGET_TILE_BYTES = 8 << 20   # ~8 MiB per pipeline buffer (per input/output)
_FAST_PATH_BYTES = 1 << 20     # below this, XLA's fused elementwise is already at roofline
_VMEM_CAP_BYTES = 48 << 20     # headroom vs v7x's 64 MiB physical VMEM per TC
_FALLBACK_LANES = 1024


def _h_sigmoid_kernel(x_ref, o_ref):
    x = x_ref[...].astype(jnp.float32)
    # relu6(x + 3) / 6 == clamp(x + 3, 0, 6) * (1/6)
    o_ref[...] = (jnp.clip(x + 3.0, 0.0, 6.0) * (1.0 / 6.0)).astype(o_ref.dtype)


def _h_sigmoid_jnp(x):
    xf = x.astype(jnp.float32)
    return (jnp.clip(xf + 3.0, 0.0, 6.0) * (1.0 / 6.0)).astype(x.dtype)


def _pick_lanes(total):
    """Largest lane width (multiple of 128) that divides `total`; else pad fallback."""
    for lanes in (1024, 512, 256, 128):
        if total % lanes == 0:
            return lanes, False
    return _FALLBACK_LANES, True


def _round_up(n, m):
    return ((n + m - 1) // m) * m


def h_sigmoid(x: jax.Array, *, min_pallas_bytes: int = _FAST_PATH_BYTES) -> jax.Array:
    """Elementwise hard-sigmoid matching torch relu6(x+3)/6 (any shape, NCHW ok)."""
    orig_shape = x.shape
    orig_dtype = x.dtype
    total = int(x.size)
    itemsize = jnp.dtype(orig_dtype).itemsize

    # Small-size fast path: pallas_call fixed overhead dwarfs the work.
    if total == 0 or total * itemsize < min_pallas_bytes:
        return _h_sigmoid_jnp(x)

    lanes, needs_pad = _pick_lanes(total)
    rows = pl.cdiv(total, lanes)

    # Sublane packing granularity: 8 rows (f32), 16 (bf16/f16), 32 (int8/fp8).
    sub = max(8, 32 // itemsize)

    # Tile rows: target ~8 MiB per buffer regardless of dtype, multiple of `sub`.
    target_rows = max(sub, (_TARGET_TILE_BYTES // (lanes * itemsize)) // sub * sub)
    tr = min(target_rows, rows)
    if rows >= 2 * sub:
        # Ensure >= 2 grid steps so both v7x TensorCores stream (and DMA overlaps
        # compute on single-TC chips). half <= rows holds whenever rows >= 2*sub.
        half = _round_up(pl.cdiv(rows, 2), sub)
        tr = min(tr, half)
    n_tiles = pl.cdiv(rows, tr)  # ragged last block is masked by Pallas

    if needs_pad:
        # Rare fallback: element count not 128-divisible -> pad the lane remainder.
        flat = x.reshape(-1)
        flat = jnp.pad(flat, (0, rows * lanes - total))
        x2d = flat.reshape(rows, lanes)
    else:
        x2d = x.reshape(rows, lanes)

    tile_bytes = tr * lanes * itemsize
    vmem_limit = int(min(_VMEM_CAP_BYTES, 4 * tile_bytes + (4 << 20)))

    out2d = pl.pallas_call(
        _h_sigmoid_kernel,
        out_shape=jax.ShapeDtypeStruct((rows, lanes), orig_dtype),
        grid=(n_tiles,),
        in_specs=[pl.BlockSpec((tr, lanes), lambda i: (i, 0))],
        out_specs=pl.BlockSpec((tr, lanes), lambda i: (i, 0)),
        compiler_params=pltpu.CompilerParams(
            dimension_semantics=("parallel",),
            vmem_limit_bytes=vmem_limit,
        ),
        cost_estimate=pl.CostEstimate(
            flops=4 * total,
            transcendentals=0,
            bytes_accessed=2 * total * itemsize,
        ),
    )(x2d)

    if needs_pad:
        return out2d.reshape(-1)[:total].reshape(orig_shape)
    return out2d.reshape(orig_shape)


if __name__ == "__main__":
    key = jax.random.PRNGKey(0)
    # Small NCHW input consistent with the module's typical use.
    x = jax.random.normal(key, (2, 4, 16, 16), dtype=jnp.float32) * 4.0
    y_ref = jnp.clip(x + 3.0, 0.0, 6.0) / 6.0

    # Force the Pallas path (bypass the small-size fast path) to prove the
    # kernel compiles and runs on TPU.
    y_pallas = jax.block_until_ready(h_sigmoid(x, min_pallas_bytes=0))
    assert y_pallas.shape == x.shape
    assert jnp.allclose(y_pallas, y_ref, atol=1e-6), "pallas path mismatch vs reference"

    # Default call on the tiny tensor exercises the XLA fast path.
    y_fast = jax.block_until_ready(h_sigmoid(x))
    assert jnp.allclose(y_fast, y_ref, atol=1e-6), "fast path mismatch vs reference"

    # Non-1024-divisible element count (picks lanes=512, no padding).
    x2 = jax.random.normal(jax.random.PRNGKey(1), (2, 3, 16, 16), dtype=jnp.float32) * 4.0
    y2 = jax.block_until_ready(h_sigmoid(x2, min_pallas_bytes=0))
    assert jnp.allclose(y2, jnp.clip(x2 + 3.0, 0.0, 6.0) / 6.0, atol=1e-6), "lanes=512 mismatch"

    # Non-128-divisible element count exercises the pad fallback.
    x3 = jax.random.normal(jax.random.PRNGKey(2), (3, 5, 7, 2), dtype=jnp.float32) * 4.0
    y3 = jax.block_until_ready(h_sigmoid(x3, min_pallas_bytes=0))
    assert jnp.allclose(y3, jnp.clip(x3 + 3.0, 0.0, 6.0) / 6.0, atol=1e-6), "pad fallback mismatch"

    print("KERNEL_OK")
</pallas_src>

<mosaic_0001>
module attributes {stable_mosaic.version = 11 : i64} {
  func.func @_h_sigmoid_kernel(%arg0: i32, %arg1: memref<2x1024xf32, #tpu.memory_space<vmem>>, %arg2: memref<2x1024xf32, #tpu.memory_space<vmem>>) attributes {dimension_semantics = [#tpu.dimension_semantics<parallel>], iteration_bounds = array<i64: 1>, scalar_prefetch = 0 : i64, scratch_operands = 0 : i64, tpu.core_type = #tpu.core_type<tc>, window_params = [{transform_indices = @transform_0, window_bounds = array<i64: 2, 1024>}, {transform_indices = @transform_1, window_bounds = array<i64: 2, 1024>}]} {
    %c0 = arith.constant 0 : index
    %c0_0 = arith.constant 0 : index
    %0 = vector.load %arg1[%c0, %c0_0] : memref<2x1024xf32, #tpu.memory_space<vmem>>, vector<2x1024xf32>
    %cst = arith.constant 3.000000e+00 : f32
    %1 = vector.broadcast %cst : f32 to vector<2x1024xf32>
    %2 = arith.addf %0, %1 : vector<2x1024xf32>
    %cst_1 = arith.constant 0.000000e+00 : f32
    %cst_2 = arith.constant 6.000000e+00 : f32
    %3 = vector.broadcast %cst_1 : f32 to vector<2x1024xf32>
    %4 = arith.maximumf %3, %2 : vector<2x1024xf32>
    %5 = vector.broadcast %cst_2 : f32 to vector<2x1024xf32>
    %6 = arith.minimumf %5, %4 : vector<2x1024xf32>
    %cst_3 = arith.constant 0.166666672 : f32
    %7 = vector.broadcast %cst_3 : f32 to vector<2x1024xf32>
    %8 = arith.mulf %6, %7 : vector<2x1024xf32>
    %c0_4 = arith.constant 0 : index
    %c0_5 = arith.constant 0 : index
    %9 = vector.load %arg2[%c0_4, %c0_5] : memref<2x1024xf32, #tpu.memory_space<vmem>>, vector<2x1024xf32>
    tpu.vector_store %arg2[%c0_4, %c0_5], %8 {strides = array<i32>} : memref<2x1024xf32, #tpu.memory_space<vmem>>, vector<2x1024xf32>,
    return
  }
  func.func @transform_0(%arg0: i32) -> (i32, i32) {
    %c0_i32 = arith.constant 0 : i32
    %c0_i32_0 = arith.constant 0 : i32
    return %arg0, %c0_i32 : i32, i32
  }
  func.func @transform_1(%arg0: i32) -> (i32, i32) {
    %c0_i32 = arith.constant 0 : i32
    %c0_i32_0 = arith.constant 0 : i32
    return %arg0, %c0_i32 : i32, i32
  }
}

</mosaic_0001>

<llo_original>
// kernel: tpu_custom_call.1
$region0: #{tpu_custom_call.1}
  #allocation0 [shape = 'u32[]', space=smem, size = 0x4, offset = 0x4, fixed_abs, tag = 'smem constant byte address 0x4 - core index']
  #allocation1 [shape = 'u32[144,128]{1,0:T(1,128)}', space=vmem, size = 0x12000, scoped, tag = 'internal scratch']
  %s0 = inlined_call_operand.hbm [shape: f32[2,1024], index: 0, kind: input, shape index: {}]
  %s1 = inlined_call_operand.hbm [shape: f32[2,1024], index: 1, kind: output, shape index: {}]
  %s2 = sld [smem:[#allocation0]]
  $region18: #{tpu_custom_call.1} parent=0
    _
  %s4 = ssub.s32 1, %s2
  %s5 = scalar_select 0, %s4, %s2
  $region1: #{tpu_custom_call.1} parent=0
    #allocation2 [shape = 'u8[8192]{0}', space=vmem, size = 0x2000, scoped, tag = 'input window, operand 0, single buffered']
    #allocation3 [shape = 's32[1]{0}', space=sflag, size = 0x4, scoped, tag = 'scoped memory for tpu_custom_call.1']
    #allocation4 [shape = 's32[1]{0}', space=sflag, size = 0x4, scoped, tag = 'scoped memory for tpu_custom_call.1']
    #allocation5 [shape = 'u8[8192]{0}', space=vmem, size = 0x2000, scoped, tag = 'output window, operand 0, single buffered']
    %6 = vsyncpa [#allocation3], 0
    %7 = vsyncpa [#allocation4], 0
    // Predicated region
    $region2: #{tpu_custom_call.1} parent=1 // pred_check
      _
    $region3: #{tpu_custom_call.1} parent=1 // pred_check_branch
      %9 = sbr.rel (0) target = $region5
    $region4: #{tpu_custom_call.1} parent=1 // pred_region
      %s11 = ssub.s32 256, 256
      %12 = vsyncadd [#allocation3], %s11
      %s14 = sshll.u32 [#allocation2], 4
      %s15 = int_to_ptr.vmem [resolvable:$true] %s14
      %17 = dma.hbm_to_vmem [thread:$0]  %s0, 256, %s15, [#allocation3]
    $region5: #{tpu_custom_call.1} parent=1 // pred_fallthru
      _
    // Predicated region
    $region6: #{tpu_custom_call.1} parent=1 // pred_check
      _
    $region7: #{tpu_custom_call.1} parent=1 // pred_check_branch
      %19 = sbr.rel (0) target = $region9
    $region8: #{tpu_custom_call.1} parent=1 // pred_region
      %20 = dma.done [#allocation3], 256
    $region9: #{tpu_custom_call.1} parent=1 // pred_fallthru
      _
    %v21 = vld [vmem:[#allocation2] sm:$0xff]
    %v22 = vld [vmem:[#allocation2 + $0x8] sm:$0xff]
    %v23 = vadd.f32 %v21, 3.0
    %v24 = vadd.f32 %v22, 3.0
    %v25 = vmax.f32 %v23, 0.0
    %v26 = vmax.f32 %v24, 0.0
    %v27 = vmin.f32 %v25, 6.0
    %v28 = vmin.f32 %v26, 6.0
    %v29 = vmul.f32 %v27, 0.16666667
    %v30 = vmul.f32 %v28, 0.16666667
    %31 = vst [vmem:[#allocation5] sm:$0xff] %v29
    %32 = vst [vmem:[#allocation5 + $0x8] sm:$0xff] %v30
    // Predicated region
    $region10: #{tpu_custom_call.1} parent=1 // pred_check
      _
    $region11: #{tpu_custom_call.1} parent=1 // pred_check_branch
      %34 = sbr.rel (0) target = $region13
    $region12: #{tpu_custom_call.1} parent=1 // pred_region
      %s36 = ssub.s32 256, 256
      %37 = vsyncadd [#allocation4], %s36
      %s39 = sshll.u32 [#allocation5], 4
      %s40 = int_to_ptr.vmem [resolvable:$true] %s39
      %42 = dma.vmem_to_hbm [thread:$0]  %s40, 256, %s1, [#allocation4]
    $region13: #{tpu_custom_call.1} parent=1 // pred_fallthru
      _
    // Predicated region
    $region14: #{tpu_custom_call.1} parent=1 // pred_check
      _
    $region15: #{tpu_custom_call.1} parent=1 // pred_check_branch
      %44 = sbr.rel (0) target = $region17
    $region16: #{tpu_custom_call.1} parent=1 // pred_region
      %45 = dma.done [#allocation4], 256
    $region17: #{tpu_custom_call.1} parent=1 // pred_fallthru
      _
    %46 = vsyncpa [#allocation3], 1
    %47 = vsyncpa [#allocation4], 1

</llo_original>
